<compile_context>
chip_gen: v7x
topology: tpu7x:2x2x1
jax: 0.10.0
libtpu: 0.0.40
codegen_flags: <defaults>
</compile_context>

<pallas_src>
import functools
import math

import jax
import jax.numpy as jnp
from jax.experimental import pallas as pl
from jax.experimental.pallas import tpu as pltpu


# ---------------------------------------------------------------------------
# Kernel
# ---------------------------------------------------------------------------

def _channel_attention_kernel(x_ref, w1a_ref, w2a_ref, w1m_ref, w2m_ref,
                              o_ref, sum_acc, max_acc, *, S, ts, needs_mask):
    """Grid = (B, num_s_tiles).  x_ref block: (1, C, ts); weights full; out (1, C, 1)."""
    s_step = pl.program_id(1)

    # ---- init accumulators at the first spatial tile of this batch element.
    @pl.when(s_step == 0)
    def _():
        sum_acc[...] = jnp.zeros_like(sum_acc)
        max_acc[...] = jnp.full_like(max_acc, -jnp.inf)

    # ---- tiled reduction over the flattened spatial (lane) axis.
    x = x_ref[0].astype(jnp.float32)                      # (C, ts), lane-dense
    if needs_mask:                                        # static Python branch
        idx = s_step * ts + jax.lax.broadcasted_iota(jnp.int32, x.shape, 1)
        valid = idx < S
        x_sum = jnp.where(valid, x, 0.0)
        x_max = jnp.where(valid, x, -jnp.inf)
    else:
        x_sum = x
        x_max = x
    sum_acc[...] = sum_acc[...] + jnp.sum(x_sum, axis=1, keepdims=True)   # (C, 1)
    max_acc[...] = jnp.maximum(max_acc[...], jnp.max(x_max, axis=1, keepdims=True))

    # ---- finalize: both channel MLPs + sigmoid, weights already in VMEM.
    @pl.when(s_step == pl.num_programs(1) - 1)
    def _():
        avg = sum_acc[...] * (1.0 / S)                    # (C, 1)  column vectors
        mx = max_acc[...]                                 # (C, 1)

        w1a = w1a_ref[...].astype(jnp.float32)            # (hidden, C)
        w2a = w2a_ref[...].astype(jnp.float32)            # (C, hidden)
        w1m = w1m_ref[...].astype(jnp.float32)
        w2m = w2m_ref[...].astype(jnp.float32)

        h_a = jnp.maximum(jnp.dot(w1a, avg, preferred_element_type=jnp.float32), 0.0)
        out_a = jnp.dot(w2a, h_a, preferred_element_type=jnp.float32)     # (C, 1)
        h_m = jnp.maximum(jnp.dot(w1m, mx, preferred_element_type=jnp.float32), 0.0)
        out_m = jnp.dot(w2m, h_m, preferred_element_type=jnp.float32)     # (C, 1)

        gate = jax.nn.sigmoid(out_a + out_m)              # (C, 1)
        o_ref[0] = gate.astype(o_ref.dtype)


# ---------------------------------------------------------------------------
# Wrapper
# ---------------------------------------------------------------------------

def channel_attention_forward(params, x):
    """x: (B, C, D, H, W) float array (same NCDHW layout as the PyTorch module).

    Returns the (B, C, 1, 1, 1) sigmoid channel-attention weights.
    """
    B, C, D, H, W = x.shape
    S = D * H * W
    x_flat = x.reshape(B, C, S)          # free view; spatial -> lane axis

    # Lane tile along S: multiple of 128 (or the full extent when S < 128).
    if S >= 512:
        ts = 512
    elif S >= 256:
        ts = 256
    elif S >= 128:
        ts = 128
    else:
        ts = S
    grid_s = pl.cdiv(S, ts)
    needs_mask = (S % ts) != 0

    w1a, w2a = params["fc1_w1"], params["fc1_w2"]
    w1m, w2m = params["fc2_w1"], params["fc2_w2"]
    hidden = w1a.shape[0]

    out = pl.pallas_call(
        functools.partial(_channel_attention_kernel,
                          S=S, ts=ts, needs_mask=needs_mask),
        out_shape=jax.ShapeDtypeStruct((B, C, 1), x.dtype),
        grid=(B, grid_s),
        in_specs=[
            pl.BlockSpec((1, C, ts), lambda b, s: (b, 0, s)),      # x tile
            pl.BlockSpec((hidden, C), lambda b, s: (0, 0)),        # fc1 conv1
            pl.BlockSpec((C, hidden), lambda b, s: (0, 0)),        # fc1 conv2
            pl.BlockSpec((hidden, C), lambda b, s: (0, 0)),        # fc2 conv1
            pl.BlockSpec((C, hidden), lambda b, s: (0, 0)),        # fc2 conv2
        ],
        out_specs=pl.BlockSpec((1, C, 1), lambda b, s: (b, 0, 0)),
        scratch_shapes=[pltpu.VMEM((C, 1), jnp.float32),           # running sum
                        pltpu.VMEM((C, 1), jnp.float32)],          # running max
        compiler_params=pltpu.CompilerParams(
            dimension_semantics=("parallel", "arbitrary")),
    )(x_flat, w1a, w2a, w1m, w2m)

    return out.reshape(B, C, 1, 1, 1)


# ---------------------------------------------------------------------------
# Deterministic parameter init (Conv3d 1x1x1, bias=False -> (Cout, Cin) matrices)
# ---------------------------------------------------------------------------

def init_channel_attention(key, in_planes, ratio=12):
    hidden = max(in_planes // ratio, 1)
    k1, k2, k3, k4 = jax.random.split(key, 4)
    s1 = 1.0 / math.sqrt(in_planes)
    s2 = 1.0 / math.sqrt(hidden)
    return dict(
        fc1_w1=s1 * jax.random.normal(k1, (hidden, in_planes), jnp.float32),
        fc1_w2=s2 * jax.random.normal(k2, (in_planes, hidden), jnp.float32),
        fc2_w1=s1 * jax.random.normal(k3, (hidden, in_planes), jnp.float32),
        fc2_w2=s2 * jax.random.normal(k4, (in_planes, hidden), jnp.float32),
    )


# ---------------------------------------------------------------------------
# Pure-JAX reference (for a correctness self-check)
# ---------------------------------------------------------------------------

def channel_attention_reference(params, x):
    B, C = x.shape[:2]
    xf = x.reshape(B, C, -1).astype(jnp.float32)
    avg = jnp.mean(xf, axis=2)                            # (B, C)
    mx = jnp.max(xf, axis=2)                              # (B, C)

    def fc(v, w1, w2):
        h = jnp.maximum(v @ w1.T, 0.0)
        return h @ w2.T

    out = jax.nn.sigmoid(fc(avg, params["fc1_w1"], params["fc1_w2"])
                         + fc(mx, params["fc2_w1"], params["fc2_w2"]))
    return out.reshape(B, C, 1, 1, 1).astype(x.dtype)


# ---------------------------------------------------------------------------

if __name__ == "__main__":
    key = jax.random.PRNGKey(0)
    kp, kx = jax.random.split(key)

    # in_planes=24 with the module's default ratio=12 -> hidden=2.
    B, C, D, H, W = 2, 24, 4, 16, 16
    params = init_channel_attention(kp, C, ratio=12)
    x = jax.random.normal(kx, (B, C, D, H, W), jnp.float32)

    fwd = jax.jit(channel_attention_forward)
    out = fwd(params, x)
    jax.block_until_ready(out)

    assert out.shape == (B, C, 1, 1, 1)
    assert bool(jnp.all(jnp.isfinite(out)))
    ref = channel_attention_reference(params, x)
    assert bool(jnp.allclose(out, ref, atol=1e-2, rtol=1e-2)), \
        float(jnp.max(jnp.abs(out - ref)))
    print("KERNEL_OK")
</pallas_src>

<mosaic_0001>
module attributes {stable_mosaic.version = 11 : i64} {
  func.func @_channel_attention_kernel(%arg0: i32, %arg1: i32, %arg2: memref<1x24x512xf32, #tpu.memory_space<vmem>>, %arg3: memref<2x24xf32, #tpu.memory_space<vmem>>, %arg4: memref<24x2xf32, #tpu.memory_space<vmem>>, %arg5: memref<2x24xf32, #tpu.memory_space<vmem>>, %arg6: memref<24x2xf32, #tpu.memory_space<vmem>>, %arg7: memref<1x24x1xf32, #tpu.memory_space<vmem>>, %arg8: memref<24x1xf32, #tpu.memory_space<vmem>>, %arg9: memref<24x1xf32, #tpu.memory_space<vmem>>) attributes {dimension_semantics = [#tpu.dimension_semantics<parallel>, #tpu.dimension_semantics<arbitrary>], iteration_bounds = array<i64: 2, 2>, scalar_prefetch = 0 : i64, scratch_operands = 2 : i64, tpu.core_type = #tpu.core_type<tc>, window_params = [{transform_indices = @transform_0, window_bounds = array<i64: 1, 24, 512>}, {pipeline_mode = #tpu.pipeline_mode<synchronous>, transform_indices = @transform_1, window_bounds = array<i64: 2, 24>}, {pipeline_mode = #tpu.pipeline_mode<synchronous>, transform_indices = @transform_2, window_bounds = array<i64: 24, 2>}, {pipeline_mode = #tpu.pipeline_mode<synchronous>, transform_indices = @transform_3, window_bounds = array<i64: 2, 24>}, {pipeline_mode = #tpu.pipeline_mode<synchronous>, transform_indices = @transform_4, window_bounds = array<i64: 24, 2>}, {transform_indices = @transform_5, window_bounds = array<i64: 1, 24, 1>}]} {
    %c0_i32 = arith.constant 0 : i32
    %0 = arith.cmpi eq, %arg1, %c0_i32 : i32
    %1 = arith.extui %0 : i1 to i32
    %c0_i32_0 = arith.constant 0 : i32
    %2 = arith.cmpi ne, %1, %c0_i32_0 : i32
    scf.if %2 {
      %cst_13 = arith.constant 0.000000e+00 : f32
      %18 = vector.broadcast %cst_13 : f32 to vector<24x1xf32>
      %c0_14 = arith.constant 0 : index
      %c0_15 = arith.constant 0 : index
      %19 = vector.load %arg8[%c0_14, %c0_15] : memref<24x1xf32, #tpu.memory_space<vmem>>, vector<24x1xf32>
      tpu.vector_store %arg8[%c0_14, %c0_15], %18 {strides = array<i32>} : memref<24x1xf32, #tpu.memory_space<vmem>>, vector<24x1xf32>,
      %cst_16 = arith.constant 0xFF800000 : f32
      %20 = vector.broadcast %cst_16 : f32 to vector<24x1xf32>
      %c0_17 = arith.constant 0 : index
      %c0_18 = arith.constant 0 : index
      %21 = vector.load %arg9[%c0_17, %c0_18] : memref<24x1xf32, #tpu.memory_space<vmem>>, vector<24x1xf32>
      tpu.vector_store %arg9[%c0_17, %c0_18], %20 {strides = array<i32>} : memref<24x1xf32, #tpu.memory_space<vmem>>, vector<24x1xf32>,
    } else {
    }
    %c0 = arith.constant 0 : index
    %c0_1 = arith.constant 0 : index
    %c0_2 = arith.constant 0 : index
    %3 = vector.load %arg2[%c0, %c0_1, %c0_2] : memref<1x24x512xf32, #tpu.memory_space<vmem>>, vector<1x24x512xf32>
    %4 = vector.shape_cast %3 : vector<1x24x512xf32> to vector<24x512xf32>
    %c0_3 = arith.constant 0 : index
    %c0_4 = arith.constant 0 : index
    %5 = vector.load %arg8[%c0_3, %c0_4] : memref<24x1xf32, #tpu.memory_space<vmem>>, vector<24x1xf32>
    %cst = arith.constant dense<0.000000e+00> : vector<24xf32>
    %6 = vector.multi_reduction <add>, %4, %cst [1] : vector<24x512xf32> to vector<24xf32>
    %7 = vector.shape_cast %6 : vector<24xf32> to vector<24x1xf32>
    %8 = arith.addf %5, %7 : vector<24x1xf32>
    %c0_5 = arith.constant 0 : index
    %c0_6 = arith.constant 0 : index
    %9 = vector.load %arg8[%c0_5, %c0_6] : memref<24x1xf32, #tpu.memory_space<vmem>>, vector<24x1xf32>
    tpu.vector_store %arg8[%c0_5, %c0_6], %8 {strides = array<i32>} : memref<24x1xf32, #tpu.memory_space<vmem>>, vector<24x1xf32>,
    %c0_7 = arith.constant 0 : index
    %c0_8 = arith.constant 0 : index
    %10 = vector.load %arg9[%c0_7, %c0_8] : memref<24x1xf32, #tpu.memory_space<vmem>>, vector<24x1xf32>
    %cst_9 = arith.constant dense<0xFF800000> : vector<24xf32>
    %11 = vector.multi_reduction <maximumf>, %4, %cst_9 [1] : vector<24x512xf32> to vector<24xf32>
    %12 = vector.shape_cast %11 : vector<24xf32> to vector<24x1xf32>
    %13 = arith.maximumf %10, %12 : vector<24x1xf32>
    %c0_10 = arith.constant 0 : index
    %c0_11 = arith.constant 0 : index
    %14 = vector.load %arg9[%c0_10, %c0_11] : memref<24x1xf32, #tpu.memory_space<vmem>>, vector<24x1xf32>
    tpu.vector_store %arg9[%c0_10, %c0_11], %13 {strides = array<i32>} : memref<24x1xf32, #tpu.memory_space<vmem>>, vector<24x1xf32>,
    %c1_i32 = arith.constant 1 : i32
    %15 = arith.cmpi eq, %arg1, %c1_i32 : i32
    %16 = arith.extui %15 : i1 to i32
    %c0_i32_12 = arith.constant 0 : i32
    %17 = arith.cmpi ne, %16, %c0_i32_12 : i32
    scf.if %17 {
      %c0_13 = arith.constant 0 : index
      %c0_14 = arith.constant 0 : index
      %18 = vector.load %arg8[%c0_13, %c0_14] : memref<24x1xf32, #tpu.memory_space<vmem>>, vector<24x1xf32>
      %cst_15 = arith.constant 9.765625E-4 : f32
      %19 = vector.broadcast %cst_15 : f32 to vector<24x1xf32>
      %20 = arith.mulf %18, %19 : vector<24x1xf32>
      %c0_16 = arith.constant 0 : index
      %c0_17 = arith.constant 0 : index
      %21 = vector.load %arg9[%c0_16, %c0_17] : memref<24x1xf32, #tpu.memory_space<vmem>>, vector<24x1xf32>
      %c0_18 = arith.constant 0 : index
      %c0_19 = arith.constant 0 : index
      %22 = vector.load %arg3[%c0_18, %c0_19] : memref<2x24xf32, #tpu.memory_space<vmem>>, vector<2x24xf32>
      %c0_20 = arith.constant 0 : index
      %c0_21 = arith.constant 0 : index
      %23 = vector.load %arg4[%c0_20, %c0_21] : memref<24x2xf32, #tpu.memory_space<vmem>>, vector<24x2xf32>
      %c0_22 = arith.constant 0 : index
      %c0_23 = arith.constant 0 : index
      %24 = vector.load %arg5[%c0_22, %c0_23] : memref<2x24xf32, #tpu.memory_space<vmem>>, vector<2x24xf32>
      %c0_24 = arith.constant 0 : index
      %c0_25 = arith.constant 0 : index
      %25 = vector.load %arg6[%c0_24, %c0_25] : memref<24x2xf32, #tpu.memory_space<vmem>>, vector<24x2xf32>
      %cst_26 = arith.constant dense<0.000000e+00> : vector<2x1xf32>
      %26 = tpu.matmul %22, %20, %cst_26 {dimension_numbers = #tpu.dot_dimension_numbers<[1], [0], [0], [1], [0, 0, 1, 1], [], []>} : vector<2x24xf32>, vector<24x1xf32>, vector<2x1xf32> -> vector<2x1xf32>
      %cst_27 = arith.constant 0.000000e+00 : f32
      %27 = vector.broadcast %cst_27 : f32 to vector<2x1xf32>
      %28 = arith.maximumf %26, %27 : vector<2x1xf32>
      %cst_28 = arith.constant dense<0.000000e+00> : vector<24x1xf32>
      %29 = tpu.matmul %23, %28, %cst_28 {dimension_numbers = #tpu.dot_dimension_numbers<[1], [0], [0], [1], [0, 0, 1, 1], [], []>} : vector<24x2xf32>, vector<2x1xf32>, vector<24x1xf32> -> vector<24x1xf32>
      %cst_29 = arith.constant dense<0.000000e+00> : vector<2x1xf32>
      %30 = tpu.matmul %24, %21, %cst_29 {dimension_numbers = #tpu.dot_dimension_numbers<[1], [0], [0], [1], [0, 0, 1, 1], [], []>} : vector<2x24xf32>, vector<24x1xf32>, vector<2x1xf32> -> vector<2x1xf32>
      %cst_30 = arith.constant 0.000000e+00 : f32
      %31 = vector.broadcast %cst_30 : f32 to vector<2x1xf32>
      %32 = arith.maximumf %30, %31 : vector<2x1xf32>
      %cst_31 = arith.constant dense<0.000000e+00> : vector<24x1xf32>
      %33 = tpu.matmul %25, %32, %cst_31 {dimension_numbers = #tpu.dot_dimension_numbers<[1], [0], [0], [1], [0, 0, 1, 1], [], []>} : vector<24x2xf32>, vector<2x1xf32>, vector<24x1xf32> -> vector<24x1xf32>
      %34 = arith.addf %29, %33 : vector<24x1xf32>
      %35 = arith.negf %34 : vector<24x1xf32>
      %36 = math.exp %35 : vector<24x1xf32>
      %cst_32 = arith.constant 1.000000e+00 : f32
      %37 = vector.broadcast %cst_32 : f32 to vector<24x1xf32>
      %38 = arith.addf %37, %36 : vector<24x1xf32>
      %39 = arith.divf %37, %38 : vector<24x1xf32>
      %c0_33 = arith.constant 0 : index
      %c0_34 = arith.constant 0 : index
      %c0_35 = arith.constant 0 : index
      %40 = vector.load %arg7[%c0_33, %c0_34, %c0_35] : memref<1x24x1xf32, #tpu.memory_space<vmem>>, vector<1x24x1xf32>
      %41 = vector.shape_cast %40 : vector<1x24x1xf32> to vector<24x1xf32>
      %42 = vector.shape_cast %39 : vector<24x1xf32> to vector<1x24x1xf32>
      tpu.vector_store %arg7[%c0_33, %c0_34, %c0_35], %42 {strides = array<i32>} : memref<1x24x1xf32, #tpu.memory_space<vmem>>, vector<1x24x1xf32>,
    } else {
    }
    return
  }
  func.func @transform_0(%arg0: i32, %arg1: i32) -> (i32, i32, i32) {
    %c0_i32 = arith.constant 0 : i32
    %c0_i32_0 = arith.constant 0 : i32
    return %arg0, %c0_i32, %arg1 : i32, i32, i32
  }
  func.func @transform_1(%arg0: i32, %arg1: i32) -> (i32, i32) {
    %c0_i32 = arith.constant 0 : i32
    %c0_i32_0 = arith.constant 0 : i32
    %c0_i32_1 = arith.constant 0 : i32
    return %c0_i32, %c0_i32_0 : i32, i32
  }
  func.func @transform_2(%arg0: i32, %arg1: i32) -> (i32, i32) {
    %c0_i32 = arith.constant 0 : i32
    %c0_i32_0 = arith.constant 0 : i32
    %c0_i32_1 = arith.constant 0 : i32
    return %c0_i32, %c0_i32_0 : i32, i32
  }
  func.func @transform_3(%arg0: i32, %arg1: i32) -> (i32, i32) {
    %c0_i32 = arith.constant 0 : i32
    %c0_i32_0 = arith.constant 0 : i32
    %c0_i32_1 = arith.constant 0 : i32
    return %c0_i32, %c0_i32_0 : i32, i32
  }
  func.func @transform_4(%arg0: i32, %arg1: i32) -> (i32, i32) {
    %c0_i32 = arith.constant 0 : i32
    %c0_i32_0 = arith.constant 0 : i32
    %c0_i32_1 = arith.constant 0 : i32
    return %c0_i32, %c0_i32_0 : i32, i32
  }
  func.func @transform_5(%arg0: i32, %arg1: i32) -> (i32, i32, i32) {
    %c0_i32 = arith.constant 0 : i32
    %c0_i32_0 = arith.constant 0 : i32
    %c0_i32_1 = arith.constant 0 : i32
    return %arg0, %c0_i32, %c0_i32_0 : i32, i32, i32
  }
}

</mosaic_0001>

<llo_original>
// kernel: channel_attention_forward.1
$region0: #{channel_attention_forward.1}
  #allocation0 [shape = 'u32[]', space=smem, size = 0x4, offset = 0x4, fixed_abs, tag = 'smem constant byte address 0x4 - core index']
  #allocation1 [shape = 'u32[144,128]{1,0:T(1,128)}', space=vmem, size = 0x12000, scoped, tag = 'internal scratch']
  #allocation2 [shape = 'f32[24,1]{1,0:T(8,128)}', space=vmem, size = 0x3000, scoped, tag = 'scratch operand']
  #allocation3 [shape = 'f32[24,1]{1,0:T(8,128)}', space=vmem, size = 0x3000, scoped, tag = 'scratch operand']
  %s0 = inlined_call_operand.vmem [shape: f32[2,24,1024], index: 0, kind: input, shape index: {}]
  %s1 = inlined_call_operand.vmem [shape: f32[2,24], index: 1, kind: input, shape index: {}]
  %s2 = inlined_call_operand.vmem [shape: f32[24,2], index: 2, kind: input, shape index: {}]
  %s3 = inlined_call_operand.vmem [shape: f32[2,24], index: 3, kind: input, shape index: {}]
  %s4 = inlined_call_operand.vmem [shape: f32[24,2], index: 4, kind: input, shape index: {}]
  %s5 = inlined_call_operand.vmem [shape: f32[2,24,1], index: 5, kind: output, shape index: {}]
  %s6 = sld [smem:[#allocation0]]
  $region84: #{channel_attention_forward.1} parent=0
    _
  %s8 = ssub.s32 1, %s6
  %s9 = scalar_select 0, %s8, %s6
  $region1: #{channel_attention_forward.1} parent=0
    #allocation4 [shape = 'u8[98304]{0}', space=vmem, size = 0x18000, scoped, tag = 'input window, operand 0']
    loop: start=0, step=1, limit=6
    $region2: #{channel_attention_forward.1} parent=1 // loop_pre_header
      _
    $region3: #{channel_attention_forward.1} parent=1 // loop_header
      %s11 = sphi 0, %s15
      %p12 = scmp.ge.s32.totalorder %s11, 6
      %s18 = sphi 0, %s30
      %s19 = sphi 0, %s26
      %s20 = sphi 0, %s18
      %s21 = sphi 0, %s19
      %s22 = sphi 0, %s20
      %s23 = sphi 0, %s21
      %s35 = sphi 0, %s37
      %s38 = sphi 0, %s35
      %s39 = sphi 0, %s38
      %s55 = sphi 0, %s39
      %s59 = sphi 0, %s59
      %s61 = sphi 0, %s59
      %s62 = sphi 0, %s61
      %s76 = sphi 0, %s62
      %s80 = sphi 0, %s80
      %s82 = sphi 0, %s80
      %s83 = sphi 0, %s82
      %s97 = sphi 0, %s83
      %s101 = sphi 0, %s101
      %s103 = sphi 0, %s101
      %s104 = sphi 0, %s103
      %s118 = sphi 0, %s104
      %s122 = sphi 0, %s122
      %s124 = sphi 0, %s122
      %s125 = sphi 0, %s124
      %s139 = sphi 0, %s125
      %s145 = sphi 0, %s147
      %s148 = sphi 0, %s145
      %s149 = sphi 0, %s148
      %s165 = sphi 0, %s149
    $region4: #{channel_attention_forward.1} parent=1 // loop_header_branch
      %14 = sbr.rel (%p12) target = $region8
    $region5: #{channel_attention_forward.1} parent=1 // loop_body
      %s16 = ssub.s32 %s11, 1
      %s17 = ssub.s32 %s11, 2
      %s24 = sadd.s32 1, %s19
      %p25 = scmp.ge.s32.totalorder %s24, 2
      %s26 = scalar_select %p25, 0, %s24
      %s27 = sadd.s32 1, %s18
      %s28 = scalar_select %p25, %s27, %s18
      %p29 = scmp.ge.s32.totalorder %s28, 2
      %s30 = scalar_select %p29, 0, %s28
      %s31 = ssub.s32 %s18, %s30
      %s32 = ssub.s32 %s19, %s26
      %s33 = sor.u32 %s31, %s32
      %p34 = scmp.eq.s32.totalorder %s33, 0
      %s36 = sadd.s32 %s35, 1
      %s37 = scalar_select %p34, %s35, %s36
      %p40 = pneg %p34
      %p41 = scmp.eq.s32.totalorder %s11, 3
      %p42 = por %p40, %p41
      %p43 = scmp.ne.s32.totalorder %s35, %s38
      %p44 = scmp.eq.s32.totalorder %s11, 0
      %p45 = por %p43, %p44
      %p46 = scmp.ne.s32.totalorder %s35, %s38
      %p47 = scmp.eq.s32.totalorder %s16, 3
      %p48 = por %p46, %p47
      %p49 = scmp.ne.s32.totalorder %s38, %s39
      %p50 = scmp.eq.s32.totalorder %s16, 0
      %p51 = por %p49, %p50
      %p52 = scmp.ne.s32.totalorder %s38, %s39
      %p53 = scmp.eq.s32.totalorder %s17, 3
      %p54 = por %p52, %p53
      %p56 = scmp.ne.s32.totalorder %s39, %s55
      %p57 = scmp.eq.s32.totalorder %s17, 0
      %p58 = por %p56, %p57
      %s60 = sadd.s32 %s59, 1
      %p63 = scmp.eq.s32.totalorder %s11, 3
      %p64 = scmp.ne.s32.totalorder %s59, %s61
      %p65 = scmp.eq.s32.totalorder %s11, 0
      %p66 = por %p64, %p65
      %p67 = scmp.ne.s32.totalorder %s59, %s61
      %p68 = scmp.eq.s32.totalorder %s16, 3
      %p69 = por %p67, %p68
      %p70 = scmp.ne.s32.totalorder %s61, %s62
      %p71 = scmp.eq.s32.totalorder %s16, 0
      %p72 = por %p70, %p71
      %p73 = scmp.ne.s32.totalorder %s61, %s62
      %p74 = scmp.eq.s32.totalorder %s17, 3
      %p75 = por %p73, %p74
      %p77 = scmp.ne.s32.totalorder %s62, %s76
      %p78 = scmp.eq.s32.totalorder %s17, 0
      %p79 = por %p77, %p78
      %s81 = sadd.s32 %s80, 1
      %p84 = scmp.eq.s32.totalorder %s11, 3
      %p85 = scmp.ne.s32.totalorder %s80, %s82
      %p86 = scmp.eq.s32.totalorder %s11, 0
      %p87 = por %p85, %p86
      %p88 = scmp.ne.s32.totalorder %s80, %s82
      %p89 = scmp.eq.s32.totalorder %s16, 3
      %p90 = por %p88, %p89
      %p91 = scmp.ne.s32.totalorder %s82, %s83
      %p92 = scmp.eq.s32.totalorder %s16, 0
      %p93 = por %p91, %p92
      %p94 = scmp.ne.s32.totalorder %s82, %s83
      %p95 = scmp.eq.s32.totalorder %s17, 3
      %p96 = por %p94, %p95
      %p98 = scmp.ne.s32.totalorder %s83, %s97
      %p99 = scmp.eq.s32.totalorder %s17, 0
      %p100 = por %p98, %p99
      %s102 = sadd.s32 %s101, 1
      %p105 = scmp.eq.s32.totalorder %s11, 3
      %p106 = scmp.ne.s32.totalorder %s101, %s103
      %p107 = scmp.eq.s32.totalorder %s11, 0
      %p108 = por %p106, %p107
      %p109 = scmp.ne.s32.totalorder %s101, %s103
      %p110 = scmp.eq.s32.totalorder %s16, 3
      %p111 = por %p109, %p110
      %p112 = scmp.ne.s32.totalorder %s103, %s104
      %p113 = scmp.eq.s32.totalorder %s16, 0
      %p114 = por %p112, %p113
      %p115 = scmp.ne.s32.totalorder %s103, %s104
      %p116 = scmp.eq.s32.totalorder %s17, 3
      %p117 = por %p115, %p116
      %p119 = scmp.ne.s32.totalorder %s104, %s118
      %p120 = scmp.eq.s32.totalorder %s17, 0
      %p121 = por %p119, %p120
      %s123 = sadd.s32 %s122, 1
      %p126 = scmp.eq.s32.totalorder %s11, 3
      %p127 = scmp.ne.s32.totalorder %s122, %s124
      %p128 = scmp.eq.s32.totalorder %s11, 0
      %p129 = por %p127, %p128
      %p130 = scmp.ne.s32.totalorder %s122, %s124
      %p131 = scmp.eq.s32.totalorder %s16, 3
      %p132 = por %p130, %p131
      %p133 = scmp.ne.s32.totalorder %s124, %s125
      %p134 = scmp.eq.s32.totalorder %s16, 0
      %p135 = por %p133, %p134
      %p136 = scmp.ne.s32.totalorder %s124, %s125
      %p137 = scmp.eq.s32.totalorder %s17, 3
      %p138 = por %p136, %p137
      %p140 = scmp.ne.s32.totalorder %s125, %s139
      %p141 = scmp.eq.s32.totalorder %s17, 0
      %p142 = por %p140, %p141
      %s143 = ssub.s32 %s18, %s30
      %p144 = scmp.eq.s32.totalorder %s143, 0
      %s146 = sadd.s32 %s145, 1
      %s147 = scalar_select %p144, %s145, %s146
      %p150 = pneg %p144
      %p151 = scmp.eq.s32.totalorder %s11, 3
      %p152 = por %p150, %p151
      %p153 = scmp.ne.s32.totalorder %s145, %s148
      %p154 = scmp.eq.s32.totalorder %s11, 0
      %p155 = por %p153, %p154
      %p156 = scmp.ne.s32.totalorder %s145, %s148
      %p157 = scmp.eq.s32.totalorder %s16, 3
      %p158 = por %p156, %p157
      %p159 = scmp.ne.s32.totalorder %s148, %s149
      %p160 = scmp.eq.s32.totalorder %s16, 0
      %p161 = por %p159, %p160
      %p162 = scmp.ne.s32.totalorder %s148, %s149
      %p163 = scmp.eq.s32.totalorder %s17, 3
      %p164 = por %p162, %p163
      %p166 = scmp.ne.s32.totalorder %s149, %s165
      %p167 = scmp.eq.s32.totalorder %s17, 0
      %p168 = por %p166, %p167
      %p169 = scmp.le.s32.totalorder 1, %s11
      %p170 = scmp.lt.s32.totalorder %s11, 5
      %p171 = pnand %p169, %p170
      %p172 = pneg %p171
      // Predicated region
      $region9: #{channel_attention_forward.1} parent=5 // pred_check
        _
      $region10: #{channel_attention_forward.1} parent=5 // pred_check_branch
        %174 = sbr.rel (%p171) target = $region12
      $region11: #{channel_attention_forward.1} parent=5 // pred_region
        %s175 = ssub.s32 %s11, 1
        // Predicated region
        $region13: #{channel_attention_forward.1} parent=11 // pred_check
          %p176 = pneg %p72
        $region14: #{channel_attention_forward.1} parent=11 // pred_check_branch
          %178 = sbr.rel (%p176) target = $region16
        $region15: #{channel_attention_forward.1} parent=11 // pred_region
          _
        $region16: #{channel_attention_forward.1} parent=11 // pred_fallthru
          _
        // Predicated region
        $region17: #{channel_attention_forward.1} parent=11 // pred_check
          %p179 = pneg %p93
        $region18: #{channel_attention_forward.1} parent=11 // pred_check_branch
          %181 = sbr.rel (%p179) target = $region20
        $region19: #{channel_attention_forward.1} parent=11 // pred_region
          _
        $region20: #{channel_attention_forward.1} parent=11 // pred_fallthru
          _
        // Predicated region
        $region21: #{channel_attention_forward.1} parent=11 // pred_check
          %p182 = pneg %p114
        $region22: #{channel_attention_forward.1} parent=11 // pred_check_branch
          %184 = sbr.rel (%p182) target = $region24
        $region23: #{channel_attention_forward.1} parent=11 // pred_region
          _
        $region24: #{channel_attention_forward.1} parent=11 // pred_fallthru
          _
        // Predicated region
        $region25: #{channel_attention_forward.1} parent=11 // pred_check
          %p185 = pneg %p135
        $region26: #{channel_attention_forward.1} parent=11 // pred_check_branch
          %187 = sbr.rel (%p185) target = $region28
        $region27: #{channel_attention_forward.1} parent=11 // pred_region
          _
        $region28: #{channel_attention_forward.1} parent=11 // pred_fallthru
          _
      $region12: #{channel_attention_forward.1} parent=5 // pred_fallthru
        _
      %p188 = scmp.lt.s32.totalorder %s11, 4
      // Predicated region
      $region29: #{channel_attention_forward.1} parent=5 // pred_check
        %p189 = pneg %p188
      $region30: #{channel_attention_forward.1} parent=5 // pred_check_branch
        %191 = sbr.rel (%p189) target = $region32
      $region31: #{channel_attention_forward.1} parent=5 // pred_region
        // Predicated region
        $region33: #{channel_attention_forward.1} parent=31 // pred_check
          %p192 = pneg %p45
        $region34: #{channel_attention_forward.1} parent=31 // pred_check_branch
          %194 = sbr.rel (%p192) target = $region36
        $region35: #{channel_attention_forward.1} parent=31 // pred_region
          %s195 = sand.u32 %s35, 1
          %s196 = sand.u32 %s35, 1
          %s197 = smul.addr %s196, 96
          %s198 = scalar_lea.vmem [#allocation4], %s197
          %s199 = smul.u32 4, %s19
          %s200 = smul.addr %s18, 24
          %s201 = sadd.s32 %s199, %s200
          %s202 = smul.addr %s201, 8
          %s203 = scalar_lea.vmem %s0, %s202
          // Predicated region
          $region37: #{channel_attention_forward.1} parent=35 // pred_check
            _
          $region38: #{channel_attention_forward.1} parent=35 // pred_check_branch
            %205 = sbr.rel (0) target = $region40
          $region39: #{channel_attention_forward.1} parent=35 // pred_region
            // Predicated region
            $region41: #{channel_attention_forward.1} parent=39 // pred_check
              _
            $region42: #{channel_attention_forward.1} parent=39 // pred_check_branch
              %207 = sbr.rel (0) target = $region44
            $region43: #{channel_attention_forward.1} parent=39 // pred_region
              loop: start=0, step=1, limit=1
              $region45: #{channel_attention_forward.1} parent=43 // loop_pre_header
                _
              $region46: #{channel_attention_forward.1} parent=43 // loop_header
                %s209 = sphi 0, %s213
                %p210 = scmp.ge.s32.totalorder %s209, 1
                %s214 = sphi %s203, %s203
                %s215 = sphi %s198, %s198
              $region47: #{channel_attention_forward.1} parent=43 // loop_header_branch
                %212 = sbr.rel (%p210) target = $region51
              $region48: #{channel_attention_forward.1} parent=43 // loop_body
                %v216 = vld [vmem:[%s214] sm:$0xff]
                %217 = vst [vmem:[%s215] sm:$0xff] %v216
                %v218 = vld [vmem:[%s214 + $0x8] sm:$0xff]
                %219 = vst [vmem:[%s215 + $0x8] sm:$0xff] %v218
                %v220 = vld [vmem:[%s214 + $0x10] sm:$0xff]
                %221 = vst [vmem:[%s215 + $0x10] sm:$0xff] %v220
                %v222 = vld [vmem:[%s214 + $0x18] sm:$0xff]
                %223 = vst [vmem:[%s215 + $0x18] sm:$0xff] %v222
                %v224 = vld [vmem:[%s214 + $0x40] sm:$0xff]
                %225 = vst [vmem:[%s215 + $0x20] sm:$0xff] %v224
                %v226 = vld [vmem:[%s214 + $0x48] sm:$0xff]
                %227 = vst [vmem:[%s215 + $0x28] sm:$0xff] %v226
                %v228 = vld [vmem:[%s214 + $0x50] sm:$0xff]
                %229 = vst [vmem:[%s215 + $0x30] sm:$0xff] %v228
                %v230 = vld [vmem:[%s214 + $0x58] sm:$0xff]
                %231 = vst [vmem:[%s215 + $0x38] sm:$0xff] %v230
                %v232 = vld [vmem:[%s214 + $0x80] sm:$0xff]
                %233 = vst [vmem:[%s215 + $0x40] sm:$0xff] %v232
                %v234 = vld [vmem:[%s214 + $0x88] sm:$0xff]
                %235 = vst [vmem:[%s215 + $0x48] sm:$0xff] %v234
                %v236 = vld [vmem:[%s214 + $0x90] sm:$0xff]
                %237 = vst [vmem:[%s215 + $0x50] sm:$0xff] %v236
                %v238 = vld [vmem:[%s214 + $0x98] sm:$0xff]
                %239 = vst [vmem:[%s215 + $0x58] sm:$0xff] %v238
              $region49: #{channel_attention_forward.1} parent=43 // loop_footer
                %s213 = sadd.s32 1, %s209
              $region50: #{channel_attention_forward.1} parent=43 // loop_footer_branch
                %208 = sbr.rel target = $region46
              $region51: #{channel_attention_forward.1} parent=43 // loop_exit
                _
            $region44: #{channel_attention_forward.1} parent=39 // pred_fallthru
              _
            // Predicated region
            $region52: #{channel_attention_forward.1} parent=39 // pred_check
              _
            $region53: #{channel_attention_forward.1} parent=39 // pred_check_branch
              %241 = sbr.rel target = $region55
            $region54: #{channel_attention_forward.1} parent=39 // pred_region
              _
            $region55: #{channel_attention_forward.1} parent=39 // pred_fallthru
              _
          $region40: #{channel_attention_forward.1} parent=35 // pred_fallthru
            _
          %242 = vnop
        $region36: #{channel_attention_forward.1} parent=31 // pred_fallthru
          _
      $region32: #{channel_attention_forward.1} parent=5 // pred_fallthru
        _
      %p243 = scmp.le.s32.totalorder 1, %s11
      %p244 = scmp.lt.s32.totalorder %s11, 5
      %p245 = pnand %p243, %p244
      %p246 = pneg %p245
      // Predicated region
      $region56: #{channel_attention_forward.1} parent=5 // pred_check
        _
      $region57: #{channel_attention_forward.1} parent=5 // pred_check_branch
        %248 = sbr.rel (%p245) target = $region59
      $region58: #{channel_attention_forward.1} parent=5 // pred_region
        %s249 = ssub.s32 %s11, 1
        %s250 = sand.u32 %s38, 1
        %s251 = sand.u32 %s38, 1
        %s252 = smul.addr %s251, 96
        %s253 = scalar_lea.vmem [#allocation4], %s252
        // Predicated region
        $region60: #{channel_attention_forward.1} parent=58 // pred_check
          %p254 = pneg %p51
        $region61: #{channel_attention_forward.1} parent=58 // pred_check_branch
          %256 = sbr.rel (%p254) target = $region63
        $region62: #{channel_attention_forward.1} parent=58 // pred_region
          _
        $region63: #{channel_attention_forward.1} parent=58 // pred_fallthru
          _
        %s257 = sand.u32 %s38, 1
        %s258 = sand.u32 %s38, 1
        %s259 = smul.addr %s258, 96
        %s260 = scalar_lea.vmem [#allocation4], %s259
        %p261 = pneg %p51
        %p262 = pneg %p48
        %p263 = pneg %p72
        %p264 = pneg %p69
        %p265 = pneg %p93
        %p266 = pneg %p90
        %p267 = pneg %p114
        %p268 = pneg %p111
        %p269 = pneg %p135
        %p270 = pneg %p132
        %p271 = pneg %p161
        %p272 = pneg %p158
        %p273 = scmp.lt.s32.totalorder %s20, 1
        %s274 = scalar_select %p273, %s20, 1
        %s275 = smul.addr %s274, 3
        %s276 = smul.addr %s275, 8
        %s277 = scalar_lea.vmem %s5, %s276
        %s278 = smul.u32 4, %s21
        %p279 = scmp.lt.s32.totalorder %s20, 1
        %s280 = scalar_select %p279, %s20, 1
        %s281 = smul.addr %s280, 3
        %s282 = smul.addr %s281, 8
        %s283 = scalar_lea.vmem %s5, %s282
        %p284 = scmp.eq.s32.totalorder %s21, 0
        // Predicated region
        $region64: #{channel_attention_forward.1} parent=58 // pred_check
          %p285 = pneg %p284
        $region65: #{channel_attention_forward.1} parent=58 // pred_check_branch
          %287 = sbr.rel (%p285) target = $region67
        $region66: #{channel_attention_forward.1} parent=58 // pred_region
          %vm288 = vcmask 7168
          %289 = vst.msk [vmem:[#allocation2] sm:$0xff] %vm288, 0.0
          %290 = vst.msk [vmem:[#allocation2 + $0x8] sm:$0xff] %vm288, 0.0
          %291 = vst.msk [vmem:[#allocation2 + $0x10] sm:$0xff] %vm288, 0.0
          %292 = vst.msk [vmem:[#allocation3] sm:$0xff] %vm288, -inf
          %293 = vst.msk [vmem:[#allocation3 + $0x8] sm:$0xff] %vm288, -inf
          %294 = vst.msk [vmem:[#allocation3 + $0x10] sm:$0xff] %vm288, -inf
        $region67: #{channel_attention_forward.1} parent=58 // pred_fallthru
          _
        %v295 = vld [vmem:[%s253] sm:$0xff]
        %v296 = vld [vmem:[%s253 + $0x8] sm:$0xff]
        %v297 = vld [vmem:[%s253 + $0x10] sm:$0xff]
        %v298 = vld [vmem:[%s253 + $0x18] sm:$0xff]
        %v299 = vld [vmem:[%s253 + $0x20] sm:$0xff]
        %v300 = vld [vmem:[%s253 + $0x28] sm:$0xff]
        %v301 = vld [vmem:[%s253 + $0x30] sm:$0xff]
        %v302 = vld [vmem:[%s253 + $0x38] sm:$0xff]
        %v303 = vld [vmem:[%s253 + $0x40] sm:$0xff]
        %v304 = vld [vmem:[%s253 + $0x48] sm:$0xff]
        %v305 = vld [vmem:[%s253 + $0x50] sm:$0xff]
        %v306 = vld [vmem:[%s253 + $0x58] sm:$0xff]
        %v307 = vld [vmem:[#allocation2] sm:$0xff]
        %v308 = vld [vmem:[#allocation2 + $0x8] sm:$0xff]
        %v309 = vld [vmem:[#allocation2 + $0x10] sm:$0xff]
        %v310 = vadd.f32 %v295, %v296
        %v311 = vadd.f32 %v310, %v297
        %v312 = vadd.f32 %v311, %v298
        %313 = vadd.xlane.f32.xlu0 %v312
        %v314 = vpop.xlane.xlu0 %313
        %v315 = vadd.f32 %v299, %v300
        %v316 = vadd.f32 %v315, %v301
        %v317 = vadd.f32 %v316, %v302
        %318 = vadd.xlane.f32.xlu0 %v317
        %v319 = vpop.xlane.xlu0 %318
        %v320 = vadd.f32 %v303, %v304
        %v321 = vadd.f32 %v320, %v305
        %v322 = vadd.f32 %v321, %v306
        %323 = vadd.xlane.f32.xlu0 %v322
        %v324 = vpop.xlane.xlu0 %323
        %v325 = vadd.f32 %v307, %v314
        %v326 = vadd.f32 %v308, %v319
        %v327 = vadd.f32 %v309, %v324
        %vm328 = vcmask 7168
        %329 = vst.msk [vmem:[#allocation2] sm:$0xff] %vm328, %v325
        %330 = vst.msk [vmem:[#allocation2 + $0x8] sm:$0xff] %vm328, %v326
        %331 = vst.msk [vmem:[#allocation2 + $0x10] sm:$0xff] %vm328, %v327
        %v332 = vld [vmem:[#allocation3] sm:$0xff]
        %v333 = vld [vmem:[#allocation3 + $0x8] sm:$0xff]
        %v334 = vld [vmem:[#allocation3 + $0x10] sm:$0xff]
        %v335 = vmax.f32 %v295, %v297
        %v336 = vmax.f32 %v296, %v298
        %v337 = vmax.f32 %v335, %v336
        %338 = vmax.xlane.f32.xlu0 %v337
        %v339 = vpop.xlane.xlu0 %338
        %v340 = vmax.f32 %v299, %v301
        %v341 = vmax.f32 %v300, %v302
        %v342 = vmax.f32 %v340, %v341
        %343 = vmax.xlane.f32.xlu0 %v342
        %v344 = vpop.xlane.xlu0 %343
        %v345 = vmax.f32 %v303, %v305
        %v346 = vmax.f32 %v304, %v306
        %v347 = vmax.f32 %v345, %v346
        %348 = vmax.xlane.f32.xlu0 %v347
        %v349 = vpop.xlane.xlu0 %348
        %v350 = vmax.f32 %v332, %v339
        %v351 = vmax.f32 %v333, %v344
        %v352 = vmax.f32 %v334, %v349
        %353 = vst.msk [vmem:[#allocation3] sm:$0xff] %vm328, %v350
        %354 = vst.msk [vmem:[#allocation3 + $0x8] sm:$0xff] %vm328, %v351
        %355 = vst.msk [vmem:[#allocation3 + $0x10] sm:$0xff] %vm328, %v352
        %p356 = scmp.eq.s32.totalorder %s21, 1
        // Predicated region
        $region68: #{channel_attention_forward.1} parent=58 // pred_check
          %p357 = pneg %p356
        $region69: #{channel_attention_forward.1} parent=58 // pred_check_branch
          %359 = sbr.rel (%p357) target = $region71
        $region70: #{channel_attention_forward.1} parent=58 // pred_region
          %v360 = vld [vmem:[#allocation2] sm:$0xff]
          %v361 = vld [vmem:[#allocation2 + $0x8] sm:$0xff]
          %v362 = vld [vmem:[#allocation2 + $0x10] sm:$0xff]
          %v363 = vmul.f32 %v360, 0.0009765625
          %v364 = vmul.f32 %v361, 0.0009765625
          %v365 = vmul.f32 %v362, 0.0009765625
          %v366 = vld [vmem:[#allocation3] sm:$0xff]
          %v367 = vld [vmem:[#allocation3 + $0x8] sm:$0xff]
          %v368 = vld [vmem:[#allocation3 + $0x10] sm:$0xff]
          %v369 = vld [vmem:[%s1] sm:$0x3]
          %v370 = vld [vmem:[%s2] sm:$0xff]
          %v371 = vld [vmem:[%s2 + $0x8] sm:$0xff]
          %v372 = vld [vmem:[%s2 + $0x10] sm:$0xff]
          %v373 = vld [vmem:[%s3] sm:$0x3]
          %v374 = vld [vmem:[%s4] sm:$0xff]
          %v375 = vld [vmem:[%s4 + $0x8] sm:$0xff]
          %v376 = vld [vmem:[%s4 + $0x10] sm:$0xff]
          %vm377 = vcmask 195584
          %v379 = vsel %vm377, %v369, 0
          %381 = vmatprep.subr.mxu0 0.0
          %382 = vmatpush1.msra.mxu0 %v363
          %383 = vmatprep.subr.mxu0 0.0
          %384 = vmatpush1.msra.mxu0 %v364
          %385 = vmatprep.subr.mxu0 0.0
          %386 = vmatpush1.msra.mxu0 %v365
          %387 = vmatprep.subr.mxu0 0.0
          %388 = vmatpush1.msra.mxu0 0.0
          %389 = vmatprep.subr.mxu0 0.0
          %390 = vmatpush1.msra.mxu0 0.0
          %391 = vmatprep.subr.mxu0 0.0
          %392 = vmatpush1.msra.mxu0 0.0
          %393 = vmatprep.subr.mxu0 0.0
          %394 = vmatpush1.msra.mxu0 0.0
          %395 = vmatprep.subr.mxu0 0.0
          %396 = vmatpush1.msra.mxu0 0.0
          %397 = vmatprep.subr.mxu0 0.0
          %398 = vmatpush1.msra.mxu0 0.0
          %399 = vmatprep.subr.mxu0 0.0
          %400 = vmatpush1.msra.mxu0 0.0
          %401 = vmatprep.subr.mxu0 0.0
          %402 = vmatpush1.msra.mxu0 0.0
          %403 = vmatprep.subr.mxu0 0.0
          %404 = vmatpush1.msra.mxu0 0.0
          %405 = vmatprep.subr.mxu0 0.0
          %406 = vmatpush1.msra.mxu0 0.0
          %407 = vmatprep.subr.mxu0 0.0
          %408 = vmatpush1.msra.mxu0 0.0
          %409 = vmatprep.subr.mxu0 0.0
          %410 = vmatpush1.msra.mxu0 0.0
          %411 = vmatprep.subr.mxu0 0.0
          %412 = vmatpush1.msra.mxu0 0.0
          %413 = vmatprep.subr.mxu0 0.0
          %414 = vmatpush1.msra.mxu0 0.0
          %415 = vmatprep.subr.mxu0 0.0
          %416 = vmatpush1.msra.mxu0 0.0
          %417 = vmatprep.subr.mxu0 0.0
          %418 = vmatpush1.msra.mxu0 0.0
          %419 = vmatprep.subr.mxu0 0.0
          %420 = vmatpush1.msra.mxu0 0.0
          %421 = vmatprep.subr.mxu0 0.0
          %422 = vmatpush1.msra.mxu0 0.0
          %423 = vmatprep.subr.mxu0 0.0
          %424 = vmatpush1.msra.mxu0 0.0
          %425 = vmatprep.subr.mxu0 0.0
          %426 = vmatpush1.msra.mxu0 0.0
          %427 = vmatprep.subr.mxu0 0.0
          %428 = vmatpush1.msra.mxu0 0.0
          %429 = vmatprep.subr.mxu0 0.0
          %430 = vmatpush1.msra.mxu0 0.0
          %431 = vmatprep.subr.mxu0 0.0
          %432 = vmatpush1.msra.mxu0 0.0
          %433 = vmatprep.subr.mxu0 0.0
          %434 = vmatpush1.msra.mxu0 0.0
          %435 = vmatprep.subr.mxu0 0.0
          %436 = vmatpush1.msra.mxu0 0.0
          %437 = vmatprep.subr.mxu0 0.0
          %438 = vmatpush1.msra.mxu0 0.0
          %439 = vmatprep.subr.mxu0 0.0
          %440 = vmatpush1.msra.mxu0 0.0
          %441 = vmatprep.subr.mxu0 0.0
          %442 = vmatpush1.msra.mxu0 0.0
          %443 = vmatprep.subr.mxu0 0.0
          %444 = vmatpush1.msra.mxu0 0.0
          %445 = vmatprep.mubr.f32.mxu0 0.0
          %446 = vmatmul.mubr.f32.gmra.mrb[0].mxu0 %v379
          %v447 = vpop.f32.mrb[0].mxu0
          %v448 = vadd.f32 0.0, %v447
          %v449 = vpop.f32.mrb[0].mxu0
          %450 = vdwg.mxu0
          %v451 = vmax.f32 %v448, 0.0
          %v453 = vsel %vm377, %v373, 0
          %455 = vmatprep.subr.mxu0 0.0
          %456 = vmatpush1.msra.mxu0 %v366
          %457 = vmatprep.subr.mxu0 0.0
          %458 = vmatpush1.msra.mxu0 %v367
          %459 = vmatprep.subr.mxu0 0.0
          %460 = vmatpush1.msra.mxu0 %v368
          %461 = vmatprep.subr.mxu0 0.0
          %462 = vmatpush1.msra.mxu0 0.0
          %463 = vmatprep.subr.mxu0 0.0
          %464 = vmatpush1.msra.mxu0 0.0
          %465 = vmatprep.subr.mxu0 0.0
          %466 = vmatpush1.msra.mxu0 0.0
          %467 = vmatprep.subr.mxu0 0.0
          %468 = vmatpush1.msra.mxu0 0.0
          %469 = vmatprep.subr.mxu0 0.0
          %470 = vmatpush1.msra.mxu0 0.0
          %471 = vmatprep.subr.mxu0 0.0
          %472 = vmatpush1.msra.mxu0 0.0
          %473 = vmatprep.subr.mxu0 0.0
          %474 = vmatpush1.msra.mxu0 0.0
          %475 = vmatprep.subr.mxu0 0.0
          %476 = vmatpush1.msra.mxu0 0.0
          %477 = vmatprep.subr.mxu0 0.0
          %478 = vmatpush1.msra.mxu0 0.0
          %479 = vmatprep.subr.mxu0 0.0
          %480 = vmatpush1.msra.mxu0 0.0
          %481 = vmatprep.subr.mxu0 0.0
          %482 = vmatpush1.msra.mxu0 0.0
          %483 = vmatprep.subr.mxu0 0.0
          %484 = vmatpush1.msra.mxu0 0.0
          %485 = vmatprep.subr.mxu0 0.0
          %486 = vmatpush1.msra.mxu0 0.0
          %487 = vmatprep.subr.mxu0 0.0
          %488 = vmatpush1.msra.mxu0 0.0
          %489 = vmatprep.subr.mxu0 0.0
          %490 = vmatpush1.msra.mxu0 0.0
          %491 = vmatprep.subr.mxu0 0.0
          %492 = vmatpush1.msra.mxu0 0.0
          %493 = vmatprep.subr.mxu0 0.0
          %494 = vmatpush1.msra.mxu0 0.0
          %495 = vmatprep.subr.mxu0 0.0
          %496 = vmatpush1.msra.mxu0 0.0
          %497 = vmatprep.subr.mxu0 0.0
          %498 = vmatpush1.msra.mxu0 0.0
          %499 = vmatprep.subr.mxu0 0.0
          %500 = vmatpush1.msra.mxu0 0.0
          %501 = vmatprep.subr.mxu0 0.0
          %502 = vmatpush1.msra.mxu0 0.0
          %503 = vmatprep.subr.mxu0 0.0
          %504 = vmatpush1.msra.mxu0 0.0
          %505 = vmatprep.subr.mxu0 0.0
          %506 = vmatpush1.msra.mxu0 0.0
          %507 = vmatprep.subr.mxu0 0.0
          %508 = vmatpush1.msra.mxu0 0.0
          %509 = vmatprep.subr.mxu0 0.0
          %510 = vmatpush1.msra.mxu0 0.0
          %511 = vmatprep.subr.mxu0 0.0
          %512 = vmatpush1.msra.mxu0 0.0
          %513 = vmatprep.subr.mxu0 0.0
          %514 = vmatpush1.msra.mxu0 0.0
          %515 = vmatprep.subr.mxu0 0.0
          %516 = vmatpush1.msra.mxu0 0.0
          %517 = vmatprep.subr.mxu0 0.0
          %518 = vmatpush1.msra.mxu0 0.0
          %519 = vmatprep.mubr.f32.mxu0 0.0
          %520 = vmatmul.mubr.f32.gmra.mrb[0].mxu0 %v453
          %v521 = vpop.f32.mrb[0].mxu0
          %v522 = vadd.f32 0.0, %v521
          %v523 = vpop.f32.mrb[0].mxu0
          %524 = vdwg.mxu0
          %v525 = vmax.f32 %v522, 0.0
          %vm526 = vcmask 15360
          %v528 = vsel %vm526, %v374, 0
          %v531 = vsel %vm526, %v375, 0
          %v534 = vsel %vm526, %v376, 0
          %vm536 = vcmask 1041408
          %v538 = vsel %vm536, %v525, 0
          %540 = vmatprep.subr.mxu0 0.0
          %541 = vmatpush1.msra.mxu0 %v538
          %542 = vmatprep.subr.mxu0 0.0
          %543 = vmatpush1.msra.mxu0 0.0
          %544 = vmatprep.subr.mxu0 0.0
          %545 = vmatpush1.msra.mxu0 0.0
          %546 = vmatprep.subr.mxu0 0.0
          %547 = vmatpush1.msra.mxu0 0.0
          %548 = vmatprep.subr.mxu0 0.0
          %549 = vmatpush1.msra.mxu0 0.0
          %550 = vmatprep.subr.mxu0 0.0
          %551 = vmatpush1.msra.mxu0 0.0
          %552 = vmatprep.subr.mxu0 0.0
          %553 = vmatpush1.msra.mxu0 0.0
          %554 = vmatprep.subr.mxu0 0.0
          %555 = vmatpush1.msra.mxu0 0.0
          %556 = vmatprep.subr.mxu0 0.0
          %557 = vmatpush1.msra.mxu0 0.0
          %558 = vmatprep.subr.mxu0 0.0
          %559 = vmatpush1.msra.mxu0 0.0
          %560 = vmatprep.subr.mxu0 0.0
          %561 = vmatpush1.msra.mxu0 0.0
          %562 = vmatprep.subr.mxu0 0.0
          %563 = vmatpush1.msra.mxu0 0.0
          %564 = vmatprep.subr.mxu0 0.0
          %565 = vmatpush1.msra.mxu0 0.0
          %566 = vmatprep.subr.mxu0 0.0
          %567 = vmatpush1.msra.mxu0 0.0
          %568 = vmatprep.subr.mxu0 0.0
          %569 = vmatpush1.msra.mxu0 0.0
          %570 = vmatprep.subr.mxu0 0.0
          %571 = vmatpush1.msra.mxu0 0.0
          %572 = vmatprep.subr.mxu0 0.0
          %573 = vmatpush1.msra.mxu0 0.0
          %574 = vmatprep.subr.mxu0 0.0
          %575 = vmatpush1.msra.mxu0 0.0
          %576 = vmatprep.subr.mxu0 0.0
          %577 = vmatpush1.msra.mxu0 0.0
          %578 = vmatprep.subr.mxu0 0.0
          %579 = vmatpush1.msra.mxu0 0.0
          %580 = vmatprep.subr.mxu0 0.0
          %581 = vmatpush1.msra.mxu0 0.0
          %582 = vmatprep.subr.mxu0 0.0
          %583 = vmatpush1.msra.mxu0 0.0
          %584 = vmatprep.subr.mxu0 0.0
          %585 = vmatpush1.msra.mxu0 0.0
          %586 = vmatprep.subr.mxu0 0.0
          %587 = vmatpush1.msra.mxu0 0.0
          %588 = vmatprep.subr.mxu0 0.0
          %589 = vmatpush1.msra.mxu0 0.0
          %590 = vmatprep.subr.mxu0 0.0
          %591 = vmatpush1.msra.mxu0 0.0
          %592 = vmatprep.subr.mxu0 0.0
          %593 = vmatpush1.msra.mxu0 0.0
          %594 = vmatprep.subr.mxu0 0.0
          %595 = vmatpush1.msra.mxu0 0.0
          %596 = vmatprep.subr.mxu0 0.0
          %597 = vmatpush1.msra.mxu0 0.0
          %598 = vmatprep.subr.mxu0 0.0
          %599 = vmatpush1.msra.mxu0 0.0
          %600 = vmatprep.subr.mxu0 0.0
          %601 = vmatpush1.msra.mxu0 0.0
          %602 = vmatprep.subr.mxu0 0.0
          %603 = vmatpush1.msra.mxu0 0.0
          %604 = vmatprep.mubr.f32.mxu0 0.0
          %605 = vmatmul.mubr.f32.gmra.mrb[0].mxu0 %v528
          %v606 = vpop.f32.mrb[0].mxu0
          %v607 = vadd.f32 0.0, %v606
          %v608 = vpop.f32.mrb[0].mxu0
          %609 = vmatprep.mubr.f32.mxu0 0.0
          %610 = vmatmul.mubr.f32.gmra.mrb[0].mxu0 %v531
          %v611 = vpop.f32.mrb[0].mxu0
          %v612 = vadd.f32 0.0, %v611
          %v613 = vpop.f32.mrb[0].mxu0
          %614 = vmatprep.mubr.f32.mxu0 0.0
          %615 = vmatmul.mubr.f32.gmra.mrb[0].mxu0 %v534
          %v616 = vpop.f32.mrb[0].mxu0
          %v617 = vadd.f32 0.0, %v616
          %v618 = vpop.f32.mrb[0].mxu0
          %619 = vdwg.mxu0
          %v621 = vsel %vm526, %v370, 0
          %v624 = vsel %vm526, %v371, 0
          %v627 = vsel %vm526, %v372, 0
          %v630 = vsel %vm536, %v451, 0
          %632 = vmatprep.subr.mxu0 0.0
          %633 = vmatpush1.msra.mxu0 %v630
          %634 = vmatprep.subr.mxu0 0.0
          %635 = vmatpush1.msra.mxu0 0.0
          %636 = vmatprep.subr.mxu0 0.0
          %637 = vmatpush1.msra.mxu0 0.0
          %638 = vmatprep.subr.mxu0 0.0
          %639 = vmatpush1.msra.mxu0 0.0
          %640 = vmatprep.subr.mxu0 0.0
          %641 = vmatpush1.msra.mxu0 0.0
          %642 = vmatprep.subr.mxu0 0.0
          %643 = vmatpush1.msra.mxu0 0.0
          %644 = vmatprep.subr.mxu0 0.0
          %645 = vmatpush1.msra.mxu0 0.0
          %646 = vmatprep.subr.mxu0 0.0
          %647 = vmatpush1.msra.mxu0 0.0
          %648 = vmatprep.subr.mxu0 0.0
          %649 = vmatpush1.msra.mxu0 0.0
          %650 = vmatprep.subr.mxu0 0.0
          %651 = vmatpush1.msra.mxu0 0.0
          %652 = vmatprep.subr.mxu0 0.0
          %653 = vmatpush1.msra.mxu0 0.0
          %654 = vmatprep.subr.mxu0 0.0
          %655 = vmatpush1.msra.mxu0 0.0
          %656 = vmatprep.subr.mxu0 0.0
          %657 = vmatpush1.msra.mxu0 0.0
          %658 = vmatprep.subr.mxu0 0.0
          %659 = vmatpush1.msra.mxu0 0.0
          %660 = vmatprep.subr.mxu0 0.0
          %661 = vmatpush1.msra.mxu0 0.0
          %662 = vmatprep.subr.mxu0 0.0
          %663 = vmatpush1.msra.mxu0 0.0
          %664 = vmatprep.subr.mxu0 0.0
          %665 = vmatpush1.msra.mxu0 0.0
          %666 = vmatprep.subr.mxu0 0.0
          %667 = vmatpush1.msra.mxu0 0.0
          %668 = vmatprep.subr.mxu0 0.0
          %669 = vmatpush1.msra.mxu0 0.0
          %670 = vmatprep.subr.mxu0 0.0
          %671 = vmatpush1.msra.mxu0 0.0
          %672 = vmatprep.subr.mxu0 0.0
          %673 = vmatpush1.msra.mxu0 0.0
          %674 = vmatprep.subr.mxu0 0.0
          %675 = vmatpush1.msra.mxu0 0.0
          %676 = vmatprep.subr.mxu0 0.0
          %677 = vmatpush1.msra.mxu0 0.0
          %678 = vmatprep.subr.mxu0 0.0
          %679 = vmatpush1.msra.mxu0 0.0
          %680 = vmatprep.subr.mxu0 0.0
          %681 = vmatpush1.msra.mxu0 0.0
          %682 = vmatprep.subr.mxu0 0.0
          %683 = vmatpush1.msra.mxu0 0.0
          %684 = vmatprep.subr.mxu0 0.0
          %685 = vmatpush1.msra.mxu0 0.0
          %686 = vmatprep.subr.mxu0 0.0
          %687 = vmatpush1.msra.mxu0 0.0
          %688 = vmatprep.subr.mxu0 0.0
          %689 = vmatpush1.msra.mxu0 0.0
          %690 = vmatprep.subr.mxu0 0.0
          %691 = vmatpush1.msra.mxu0 0.0
          %692 = vmatprep.subr.mxu0 0.0
          %693 = vmatpush1.msra.mxu0 0.0
          %694 = vmatprep.subr.mxu0 0.0
          %695 = vmatpush1.msra.mxu0 0.0
          %696 = vmatprep.mubr.f32.mxu0 0.0
          %697 = vmatmul.mubr.f32.gmra.mrb[0].mxu0 %v621
          %v698 = vpop.f32.mrb[0].mxu0
          %v699 = vadd.f32 %v607, %v698
          %v700 = vpop.f32.mrb[0].mxu0
          %701 = vmatprep.mubr.f32.mxu0 0.0
          %702 = vmatmul.mubr.f32.gmra.mrb[0].mxu0 %v624
          %v703 = vpop.f32.mrb[0].mxu0
          %v704 = vadd.f32 %v612, %v703
          %v705 = vpop.f32.mrb[0].mxu0
          %706 = vmatprep.mubr.f32.mxu0 0.0
          %707 = vmatmul.mubr.f32.gmra.mrb[0].mxu0 %v627
          %v708 = vpop.f32.mrb[0].mxu0
          %v709 = vadd.f32 %v617, %v708
          %v710 = vpop.f32.mrb[0].mxu0
          %711 = vdwg.mxu0
          %v712 = vxor.u32 %v699, 2147483648
          %v713 = vxor.u32 %v704, 2147483648
          %v714 = vxor.u32 %v709, 2147483648
          %v715 = vmul.f32 %v712, 1.442695
          %v716 = vpow.pop %v715
          %v717 = vmul.f32 %v713, 1.442695
          %v718 = vpow.pop %v717
          %v719 = vmul.f32 %v714, 1.442695
          %v720 = vpow.pop %v719
          %v721 = vadd.f32 %v716, 1.0
          %v722 = vadd.f32 %v718, 1.0
          %v723 = vadd.f32 %v720, 1.0
          %v724 = vrcp.pop %v721
          %v725 = vmul.f32 1.0, %v724
          %v726 = vrcp.pop %v722
          %v727 = vmul.f32 1.0, %v726
          %v728 = vrcp.pop %v723
          %v729 = vmul.f32 1.0, %v728
          %730 = vst.msk [vmem:[%s283] sm:$0xff] %vm328, %v725
          %731 = vst.msk [vmem:[%s283 + $0x8] sm:$0xff] %vm328, %v727
          %732 = vst.msk [vmem:[%s283 + $0x10] sm:$0xff] %vm328, %v729
        $region71: #{channel_attention_forward.1} parent=58 // pred_fallthru
          _
        %p733 = scmp.lt.s32.totalorder %s20, 1
        %s734 = scalar_select %p733, %s20, 1
        %s735 = smul.addr %s734, 3
        %s736 = smul.addr %s735, 8
        %s737 = scalar_lea.vmem %s5, %s736
        // Predicated region
        $region72: #{channel_attention_forward.1} parent=58 // pred_check
          %p738 = pneg %p158
        $region73: #{channel_attention_forward.1} parent=58 // pred_check_branch
          %740 = sbr.rel (%p738) target = $region75
        $region74: #{channel_attention_forward.1} parent=58 // pred_region
          _
        $region75: #{channel_attention_forward.1} parent=58 // pred_fallthru
          _
      $region59: #{channel_attention_forward.1} parent=5 // pred_fallthru
        _
      %p741 = scmp.le.s32.totalorder 2, %s11
      // Predicated region
      $region76: #{channel_attention_forward.1} parent=5 // pred_check
        %p742 = pneg %p741
      $region77: #{channel_attention_forward.1} parent=5 // pred_check_branch
        %744 = sbr.rel (%p742) target = $region79
      $region78: #{channel_attention_forward.1} parent=5 // pred_region
        %s745 = ssub.s32 %s11, 2
        // Predicated region
        $region80: #{channel_attention_forward.1} parent=78 // pred_check
          %p746 = pneg %p164
        $region81: #{channel_attention_forward.1} parent=78 // pred_check_branch
          %748 = sbr.rel (%p746) target = $region83
        $region82: #{channel_attention_forward.1} parent=78 // pred_region
          %p749 = scmp.lt.s32.totalorder %s22, 1
          %s750 = scalar_select %p749, %s22, 1
          %s751 = smul.addr %s750, 3
          %s752 = smul.addr %s751, 8
          %s753 = scalar_lea.vmem %s5, %s752
        $region83: #{channel_attention_forward.1} parent=78 // pred_fallthru
          _
      $region79: #{channel_attention_forward.1} parent=5 // pred_fallthru
        _
    $region6: #{channel_attention_forward.1} parent=1 // loop_footer
      %s15 = sadd.s32 1, %s11
    $region7: #{channel_attention_forward.1} parent=1 // loop_footer_branch
      %10 = sbr.rel target = $region3
    $region8: #{channel_attention_forward.1} parent=1 // loop_exit
      _

</llo_original>
